<compile_context>
chip_gen: v5e
topology: v5e:2x2
jax: 0.10.0
libtpu: 0.0.40
codegen_flags: <defaults>
</compile_context>

<pallas_src>
import jax
import jax.numpy as jnp
from jax.experimental import pallas as pl
from jax.experimental.pallas import tpu as pltpu


def _round_up(v, m):
    return ((v + m - 1) // m) * m


def _mdn_kernel(x_ref, w_pi_ref, b_pi_ref, w_sig_ref, b_sig_ref,
                w_mu_ref, b_mu_ref, pi_ref, sig_ref, mu_ref):
    x = x_ref[...]

    # pi head: linear + numerically-stable softmax over the mixture axis.
    logits = jnp.dot(x, w_pi_ref[...],
                     preferred_element_type=jnp.float32) + b_pi_ref[...]
    m = jnp.max(logits, axis=1, keepdims=True)
    e = jnp.exp(logits - m)
    pi_ref[...] = e / jnp.sum(e, axis=1, keepdims=True)   # exact divide (free here)

    # sigma head: linear + exp.
    sig_ref[...] = jnp.exp(
        jnp.dot(x, w_sig_ref[...], preferred_element_type=jnp.float32)
        + b_sig_ref[...])

    # mu head: plain linear.
    mu_ref[...] = (jnp.dot(x, w_mu_ref[...], preferred_element_type=jnp.float32)
                   + b_mu_ref[...])


def _choose_batch_tile(B, tile_b):
    """Pick a batch tile (multiple of 8) with >=2 grid steps when possible."""
    b8 = _round_up(max(B, 1), 8)
    n_steps = max(-(-b8 // tile_b), 2 if b8 > 8 else 1)   # megacore: >=2 steps
    tb = _round_up(-(-b8 // n_steps), 8)
    b_pad = _round_up(b8, tb)
    return tb, b_pad


def _vmem_bytes(rows, cols):
    # f32 VMEM footprint with lane padding to 128.
    return rows * _round_up(cols, 128) * 4


def mdn_forward(x, params, num_mixtures, out_features, *, tile_b=4096):
    """x: (B, input_size) float32. Returns [pi, sigma, mu] like the torch module."""
    w_pi, b_pi, w_sig, b_sig, w_mu, b_mu = params
    B, input_size = x.shape
    mo = num_mixtures * out_features

    tb, b_pad = _choose_batch_tile(B, tile_b)
    if b_pad != B:
        x = jnp.pad(x, ((0, b_pad - B), (0, 0)))

    # VMEM budget: double-buffered x + 3 outputs, plus resident weights/biases,
    # plus headroom for elementwise temporaries.  Clamped well under v7x's 64 MiB.
    need = 2 * (_vmem_bytes(tb, input_size) + _vmem_bytes(tb, num_mixtures)
                + 2 * _vmem_bytes(tb, mo))
    need += _vmem_bytes(input_size, num_mixtures) + 2 * _vmem_bytes(input_size, mo)
    need += 3 * _vmem_bytes(8, 128)                      # biases (tile-padded)
    vmem_limit = max(16 << 20, min(2 * need + (8 << 20), 56 << 20))

    resident = lambda i: (0, 0)          # weights/biases stay in VMEM across steps
    batched = lambda i: (i, 0)           # x / outputs tiled over the batch

    pi, sigma, mu = pl.pallas_call(
        _mdn_kernel,
        out_shape=(
            jax.ShapeDtypeStruct((b_pad, num_mixtures), jnp.float32),
            jax.ShapeDtypeStruct((b_pad, mo), jnp.float32),
            jax.ShapeDtypeStruct((b_pad, mo), jnp.float32),
        ),
        grid=(b_pad // tb,),
        in_specs=[
            pl.BlockSpec((tb, input_size), batched),          # x
            pl.BlockSpec((input_size, num_mixtures), resident),  # w_pi
            pl.BlockSpec((1, num_mixtures), resident),           # b_pi
            pl.BlockSpec((input_size, mo), resident),            # w_sigma
            pl.BlockSpec((1, mo), resident),                     # b_sigma
            pl.BlockSpec((input_size, mo), resident),            # w_mu
            pl.BlockSpec((1, mo), resident),                     # b_mu
        ],
        out_specs=[
            pl.BlockSpec((tb, num_mixtures), batched),
            pl.BlockSpec((tb, mo), batched),
            pl.BlockSpec((tb, mo), batched),
        ],
        compiler_params=pltpu.CompilerParams(
            dimension_semantics=("parallel",),
            vmem_limit_bytes=vmem_limit,
        ),
    )(x, w_pi, b_pi, w_sig, b_sig, w_mu, b_mu)

    if b_pad != B:  # drop batch padding only if we actually added it
        pi, sigma, mu = pi[:B], sigma[:B], mu[:B]
    sigma = sigma.reshape(B, num_mixtures, out_features)   # metadata-only reshape
    mu = mu.reshape(B, num_mixtures, out_features)
    return [pi, sigma, mu]


def init_params(key, input_size, num_mixtures, out_features):
    """Deterministic synthetic parameters (torch Linear shapes, stored transposed)."""
    mo = num_mixtures * out_features
    ks = jax.random.split(key, 6)
    scale = 1.0 / jnp.sqrt(input_size)
    w_pi = jax.random.uniform(ks[0], (input_size, num_mixtures), jnp.float32, -scale, scale)
    b_pi = jax.random.uniform(ks[1], (1, num_mixtures), jnp.float32, -scale, scale)
    w_sig = jax.random.uniform(ks[2], (input_size, mo), jnp.float32, -scale, scale)
    b_sig = jax.random.uniform(ks[3], (1, mo), jnp.float32, -scale, scale)
    w_mu = jax.random.uniform(ks[4], (input_size, mo), jnp.float32, -scale, scale)
    b_mu = jax.random.uniform(ks[5], (1, mo), jnp.float32, -scale, scale)
    return (w_pi, b_pi, w_sig, b_sig, w_mu, b_mu)


if __name__ == "__main__":
    input_size = 32
    num_mixtures = 4
    out_features = 8
    batch = 2

    key = jax.random.PRNGKey(0)
    k_x, k_p = jax.random.split(key)
    x = jax.random.normal(k_x, (batch, input_size), jnp.float32)
    params = init_params(k_p, input_size, num_mixtures, out_features)

    pi, sigma, mu = mdn_forward(x, params, num_mixtures, out_features)
    jax.block_until_ready((pi, sigma, mu))

    # Reference check in plain JAX.
    w_pi, b_pi, w_sig, b_sig, w_mu, b_mu = params
    pi_ref = jax.nn.softmax(x @ w_pi + b_pi, axis=1)
    sigma_ref = jnp.exp(x @ w_sig + b_sig).reshape(-1, num_mixtures, out_features)
    mu_ref = (x @ w_mu + b_mu).reshape(-1, num_mixtures, out_features)
    assert jnp.allclose(pi, pi_ref, atol=1e-4, rtol=1e-4)
    assert jnp.allclose(sigma, sigma_ref, atol=1e-4, rtol=1e-4)
    assert jnp.allclose(mu, mu_ref, atol=1e-4, rtol=1e-4)
    assert pi.shape == (batch, num_mixtures)
    assert sigma.shape == (batch, num_mixtures, out_features)
    assert mu.shape == (batch, num_mixtures, out_features)

    print("KERNEL_OK")
</pallas_src>

<mosaic_0001>
module attributes {stable_mosaic.version = 11 : i64} {
  func.func @_mdn_kernel(%arg0: i32, %arg1: memref<8x32xf32, #tpu.memory_space<vmem>>, %arg2: memref<32x4xf32, #tpu.memory_space<vmem>>, %arg3: memref<1x4xf32, #tpu.memory_space<vmem>>, %arg4: memref<32x32xf32, #tpu.memory_space<vmem>>, %arg5: memref<1x32xf32, #tpu.memory_space<vmem>>, %arg6: memref<32x32xf32, #tpu.memory_space<vmem>>, %arg7: memref<1x32xf32, #tpu.memory_space<vmem>>, %arg8: memref<8x4xf32, #tpu.memory_space<vmem>>, %arg9: memref<8x32xf32, #tpu.memory_space<vmem>>, %arg10: memref<8x32xf32, #tpu.memory_space<vmem>>) attributes {dimension_semantics = [#tpu.dimension_semantics<parallel>], iteration_bounds = array<i64: 1>, scalar_prefetch = 0 : i64, scratch_operands = 0 : i64, tpu.core_type = #tpu.core_type<tc>, window_params = [{transform_indices = @transform_0, window_bounds = array<i64: 8, 32>}, {pipeline_mode = #tpu.pipeline_mode<synchronous>, transform_indices = @transform_1, window_bounds = array<i64: 32, 4>}, {pipeline_mode = #tpu.pipeline_mode<synchronous>, transform_indices = @transform_2, window_bounds = array<i64: 1, 4>}, {pipeline_mode = #tpu.pipeline_mode<synchronous>, transform_indices = @transform_3, window_bounds = array<i64: 32, 32>}, {pipeline_mode = #tpu.pipeline_mode<synchronous>, transform_indices = @transform_4, window_bounds = array<i64: 1, 32>}, {pipeline_mode = #tpu.pipeline_mode<synchronous>, transform_indices = @transform_5, window_bounds = array<i64: 32, 32>}, {pipeline_mode = #tpu.pipeline_mode<synchronous>, transform_indices = @transform_6, window_bounds = array<i64: 1, 32>}, {transform_indices = @transform_7, window_bounds = array<i64: 8, 4>}, {transform_indices = @transform_8, window_bounds = array<i64: 8, 32>}, {transform_indices = @transform_9, window_bounds = array<i64: 8, 32>}]} {
    %c0 = arith.constant 0 : index
    %c0_0 = arith.constant 0 : index
    %0 = vector.load %arg1[%c0, %c0_0] : memref<8x32xf32, #tpu.memory_space<vmem>>, vector<8x32xf32>
    %c0_1 = arith.constant 0 : index
    %c0_2 = arith.constant 0 : index
    %1 = vector.load %arg2[%c0_1, %c0_2] : memref<32x4xf32, #tpu.memory_space<vmem>>, vector<32x4xf32>
    %cst = arith.constant dense<0.000000e+00> : vector<8x4xf32>
    %2 = tpu.matmul %0, %1, %cst {dimension_numbers = #tpu.dot_dimension_numbers<[1], [0], [0], [1], [0, 0, 1, 1], [], []>} : vector<8x32xf32>, vector<32x4xf32>, vector<8x4xf32> -> vector<8x4xf32>
    %c0_3 = arith.constant 0 : index
    %c0_4 = arith.constant 0 : index
    %3 = vector.load %arg3[%c0_3, %c0_4] : memref<1x4xf32, #tpu.memory_space<vmem>>, vector<1x4xf32>
    %4 = vector.broadcast %3 : vector<1x4xf32> to vector<8x4xf32>
    %5 = arith.addf %2, %4 : vector<8x4xf32>
    %cst_5 = arith.constant dense<0xFF800000> : vector<8xf32>
    %6 = vector.multi_reduction <maximumf>, %5, %cst_5 [1] : vector<8x4xf32> to vector<8xf32>
    %7 = vector.shape_cast %6 : vector<8xf32> to vector<8x1xf32>
    %8 = vector.broadcast %7 : vector<8x1xf32> to vector<8x4xf32>
    %9 = arith.subf %5, %8 : vector<8x4xf32>
    %10 = math.exp %9 : vector<8x4xf32>
    %cst_6 = arith.constant dense<0.000000e+00> : vector<8xf32>
    %11 = vector.multi_reduction <add>, %10, %cst_6 [1] : vector<8x4xf32> to vector<8xf32>
    %12 = vector.shape_cast %11 : vector<8xf32> to vector<8x1xf32>
    %13 = vector.broadcast %12 : vector<8x1xf32> to vector<8x4xf32>
    %14 = arith.divf %10, %13 : vector<8x4xf32>
    %c0_7 = arith.constant 0 : index
    %c0_8 = arith.constant 0 : index
    %15 = vector.load %arg8[%c0_7, %c0_8] : memref<8x4xf32, #tpu.memory_space<vmem>>, vector<8x4xf32>
    tpu.vector_store %arg8[%c0_7, %c0_8], %14 {strides = array<i32>} : memref<8x4xf32, #tpu.memory_space<vmem>>, vector<8x4xf32>,
    %c0_9 = arith.constant 0 : index
    %c0_10 = arith.constant 0 : index
    %16 = vector.load %arg4[%c0_9, %c0_10] : memref<32x32xf32, #tpu.memory_space<vmem>>, vector<32x32xf32>
    %cst_11 = arith.constant dense<0.000000e+00> : vector<8x32xf32>
    %17 = tpu.matmul %0, %16, %cst_11 {dimension_numbers = #tpu.dot_dimension_numbers<[1], [0], [0], [1], [0, 0, 1, 1], [], []>} : vector<8x32xf32>, vector<32x32xf32>, vector<8x32xf32> -> vector<8x32xf32>
    %c0_12 = arith.constant 0 : index
    %c0_13 = arith.constant 0 : index
    %18 = vector.load %arg5[%c0_12, %c0_13] : memref<1x32xf32, #tpu.memory_space<vmem>>, vector<1x32xf32>
    %19 = vector.broadcast %18 : vector<1x32xf32> to vector<8x32xf32>
    %20 = arith.addf %17, %19 : vector<8x32xf32>
    %21 = math.exp %20 : vector<8x32xf32>
    %c0_14 = arith.constant 0 : index
    %c0_15 = arith.constant 0 : index
    %22 = vector.load %arg9[%c0_14, %c0_15] : memref<8x32xf32, #tpu.memory_space<vmem>>, vector<8x32xf32>
    tpu.vector_store %arg9[%c0_14, %c0_15], %21 {strides = array<i32>} : memref<8x32xf32, #tpu.memory_space<vmem>>, vector<8x32xf32>,
    %c0_16 = arith.constant 0 : index
    %c0_17 = arith.constant 0 : index
    %23 = vector.load %arg6[%c0_16, %c0_17] : memref<32x32xf32, #tpu.memory_space<vmem>>, vector<32x32xf32>
    %cst_18 = arith.constant dense<0.000000e+00> : vector<8x32xf32>
    %24 = tpu.matmul %0, %23, %cst_18 {dimension_numbers = #tpu.dot_dimension_numbers<[1], [0], [0], [1], [0, 0, 1, 1], [], []>} : vector<8x32xf32>, vector<32x32xf32>, vector<8x32xf32> -> vector<8x32xf32>
    %c0_19 = arith.constant 0 : index
    %c0_20 = arith.constant 0 : index
    %25 = vector.load %arg7[%c0_19, %c0_20] : memref<1x32xf32, #tpu.memory_space<vmem>>, vector<1x32xf32>
    %26 = vector.broadcast %25 : vector<1x32xf32> to vector<8x32xf32>
    %27 = arith.addf %24, %26 : vector<8x32xf32>
    %c0_21 = arith.constant 0 : index
    %c0_22 = arith.constant 0 : index
    %28 = vector.load %arg10[%c0_21, %c0_22] : memref<8x32xf32, #tpu.memory_space<vmem>>, vector<8x32xf32>
    tpu.vector_store %arg10[%c0_21, %c0_22], %27 {strides = array<i32>} : memref<8x32xf32, #tpu.memory_space<vmem>>, vector<8x32xf32>,
    return
  }
  func.func @transform_0(%arg0: i32) -> (i32, i32) {
    %c0_i32 = arith.constant 0 : i32
    %c0_i32_0 = arith.constant 0 : i32
    return %arg0, %c0_i32 : i32, i32
  }
  func.func @transform_1(%arg0: i32) -> (i32, i32) {
    %c0_i32 = arith.constant 0 : i32
    %c0_i32_0 = arith.constant 0 : i32
    %c0_i32_1 = arith.constant 0 : i32
    return %c0_i32, %c0_i32_0 : i32, i32
  }
  func.func @transform_2(%arg0: i32) -> (i32, i32) {
    %c0_i32 = arith.constant 0 : i32
    %c0_i32_0 = arith.constant 0 : i32
    %c0_i32_1 = arith.constant 0 : i32
    return %c0_i32, %c0_i32_0 : i32, i32
  }
  func.func @transform_3(%arg0: i32) -> (i32, i32) {
    %c0_i32 = arith.constant 0 : i32
    %c0_i32_0 = arith.constant 0 : i32
    %c0_i32_1 = arith.constant 0 : i32
    return %c0_i32, %c0_i32_0 : i32, i32
  }
  func.func @transform_4(%arg0: i32) -> (i32, i32) {
    %c0_i32 = arith.constant 0 : i32
    %c0_i32_0 = arith.constant 0 : i32
    %c0_i32_1 = arith.constant 0 : i32
    return %c0_i32, %c0_i32_0 : i32, i32
  }
  func.func @transform_5(%arg0: i32) -> (i32, i32) {
    %c0_i32 = arith.constant 0 : i32
    %c0_i32_0 = arith.constant 0 : i32
    %c0_i32_1 = arith.constant 0 : i32
    return %c0_i32, %c0_i32_0 : i32, i32
  }
  func.func @transform_6(%arg0: i32) -> (i32, i32) {
    %c0_i32 = arith.constant 0 : i32
    %c0_i32_0 = arith.constant 0 : i32
    %c0_i32_1 = arith.constant 0 : i32
    return %c0_i32, %c0_i32_0 : i32, i32
  }
  func.func @transform_7(%arg0: i32) -> (i32, i32) {
    %c0_i32 = arith.constant 0 : i32
    %c0_i32_0 = arith.constant 0 : i32
    return %arg0, %c0_i32 : i32, i32
  }
  func.func @transform_8(%arg0: i32) -> (i32, i32) {
    %c0_i32 = arith.constant 0 : i32
    %c0_i32_0 = arith.constant 0 : i32
    return %arg0, %c0_i32 : i32, i32
  }
  func.func @transform_9(%arg0: i32) -> (i32, i32) {
    %c0_i32 = arith.constant 0 : i32
    %c0_i32_0 = arith.constant 0 : i32
    return %arg0, %c0_i32 : i32, i32
  }
}

</mosaic_0001>

<llo_original>
// kernel: tpu_custom_call.1
$region0: #{tpu_custom_call.1}
  #allocation0 [shape = 'u32[]', space=smem, size = 0x4, offset = 0x4, fixed_abs, tag = 'smem constant byte address 0x4 - core index']
  #allocation1 [shape = 'u32[72,128]{1,0:T(1,128)}', space=vmem, size = 0x9000, scoped, tag = 'internal scratch']
  %s0 = inlined_call_operand.hbm [shape: f32[8,32], index: 0, kind: input, shape index: {}]
  %s1 = inlined_call_operand.vmem [shape: f32[32,4], index: 1, kind: input, shape index: {}]
  %s2 = inlined_call_operand.vmem [shape: f32[1,4], index: 2, kind: input, shape index: {}]
  %s3 = inlined_call_operand.vmem [shape: f32[32,32], index: 3, kind: input, shape index: {}]
  %s4 = inlined_call_operand.vmem [shape: f32[1,32], index: 4, kind: input, shape index: {}]
  %s5 = inlined_call_operand.hbm [shape: f32[32,32], index: 5, kind: input, shape index: {}]
  %s6 = inlined_call_operand.vmem [shape: f32[1,32], index: 6, kind: input, shape index: {}]
  %s7 = inlined_call_operand.vmem [shape: f32[8,4], index: 7, kind: output, shape index: {0}]
  %s8 = inlined_call_operand.hbm [shape: f32[8,32], index: 8, kind: output, shape index: {1}]
  %s9 = inlined_call_operand.hbm [shape: f32[8,32], index: 9, kind: output, shape index: {2}]
  %10 = xla_tuple %s7, %s8, %s9
  %s11 = sld [smem:[#allocation0]]
  $region62: #{tpu_custom_call.1} parent=0
    _
  %s13 = ssub.s32 1, %s11
  %s14 = scalar_select 0, %s13, %s11
  $region1: #{tpu_custom_call.1} parent=0
    #allocation2 [shape = 'u8[4096]{0}', space=vmem, size = 0x1000, scoped, tag = 'input window, operand 0, single buffered']
    #allocation3 [shape = 's32[1]{0}', space=sflag, size = 0x4, scoped, tag = 'scoped memory for tpu_custom_call.1']
    #allocation4 [shape = 's32[1]{0}', space=sflag, size = 0x4, scoped, tag = 'scoped memory for tpu_custom_call.1']
    #allocation5 [shape = 'u8[16384]{0}', space=vmem, size = 0x4000, scoped, tag = 'input window, operand 5, single buffered']
    #allocation6 [shape = 's32[1]{0}', space=sflag, size = 0x4, scoped, tag = 'scoped memory for tpu_custom_call.1']
    #allocation7 [shape = 'u8[4096]{0}', space=vmem, size = 0x1000, scoped, tag = 'output window, operand 1, single buffered']
    #allocation8 [shape = 'u8[4096]{0}', space=vmem, size = 0x1000, scoped, tag = 'output window, operand 2, single buffered']
    #allocation9 [shape = 's32[1]{0}', space=sflag, size = 0x4, scoped, tag = 'scoped memory for tpu_custom_call.1']
    %15 = vsyncpa [#allocation3], 0
    %16 = vsyncpa [#allocation6], 0
    %17 = vsyncpa [#allocation4], 0
    %18 = vsyncpa [#allocation9], 0
    // Predicated region
    $region2: #{tpu_custom_call.1} parent=1 // pred_check
      _
    $region3: #{tpu_custom_call.1} parent=1 // pred_check_branch
      %20 = sbr.rel (0) target = $region5
    $region4: #{tpu_custom_call.1} parent=1 // pred_region
      %22 = vsyncadd [#allocation3], 0
      %s24 = sshll.u32 %s0, 4
      %s25 = int_to_ptr.hbm [resolvable:$true] %s24
      %s26 = sshll.u32 [#allocation2], 4
      %s27 = int_to_ptr.vmem [resolvable:$true] %s26
      %29 = dma.hbm_to_vmem [thread:$0]  %s25, 128, %s27, [#allocation3]
    $region5: #{tpu_custom_call.1} parent=1 // pred_fallthru
      _
    // Predicated region
    $region6: #{tpu_custom_call.1} parent=1 // pred_check
      _
    $region7: #{tpu_custom_call.1} parent=1 // pred_check_branch
      %31 = sbr.rel (0) target = $region9
    $region8: #{tpu_custom_call.1} parent=1 // pred_region
      _
    $region9: #{tpu_custom_call.1} parent=1 // pred_fallthru
      _
    // Predicated region
    $region10: #{tpu_custom_call.1} parent=1 // pred_check
      _
    $region11: #{tpu_custom_call.1} parent=1 // pred_check_branch
      %33 = sbr.rel (0) target = $region13
    $region12: #{tpu_custom_call.1} parent=1 // pred_region
      _
    $region13: #{tpu_custom_call.1} parent=1 // pred_fallthru
      _
    // Predicated region
    $region14: #{tpu_custom_call.1} parent=1 // pred_check
      _
    $region15: #{tpu_custom_call.1} parent=1 // pred_check_branch
      %35 = sbr.rel (0) target = $region17
    $region16: #{tpu_custom_call.1} parent=1 // pred_region
      _
    $region17: #{tpu_custom_call.1} parent=1 // pred_fallthru
      _
    // Predicated region
    $region18: #{tpu_custom_call.1} parent=1 // pred_check
      _
    $region19: #{tpu_custom_call.1} parent=1 // pred_check_branch
      %37 = sbr.rel (0) target = $region21
    $region20: #{tpu_custom_call.1} parent=1 // pred_region
      _
    $region21: #{tpu_custom_call.1} parent=1 // pred_fallthru
      _
    // Predicated region
    $region22: #{tpu_custom_call.1} parent=1 // pred_check
      _
    $region23: #{tpu_custom_call.1} parent=1 // pred_check_branch
      %39 = sbr.rel (0) target = $region25
    $region24: #{tpu_custom_call.1} parent=1 // pred_region
      %41 = vsyncadd [#allocation6], 0
      %s42 = sshll.u32 %s5, 4
      %s43 = int_to_ptr.hbm [resolvable:$true] %s42
      %s44 = sshll.u32 [#allocation5], 4
      %s45 = int_to_ptr.vmem [resolvable:$true] %s44
      %50 = dma.hbm_to_vmem [thread:$0]  %s43, 512, %s45, [#allocation6], 128, 128, 8
    $region25: #{tpu_custom_call.1} parent=1 // pred_fallthru
      _
    // Predicated region
    $region26: #{tpu_custom_call.1} parent=1 // pred_check
      _
    $region27: #{tpu_custom_call.1} parent=1 // pred_check_branch
      %52 = sbr.rel (0) target = $region29
    $region28: #{tpu_custom_call.1} parent=1 // pred_region
      _
    $region29: #{tpu_custom_call.1} parent=1 // pred_fallthru
      _
    // Predicated region
    $region30: #{tpu_custom_call.1} parent=1 // pred_check
      _
    $region31: #{tpu_custom_call.1} parent=1 // pred_check_branch
      %54 = sbr.rel (0) target = $region33
    $region32: #{tpu_custom_call.1} parent=1 // pred_region
      %56 = dma.done [#allocation3], 128
    $region33: #{tpu_custom_call.1} parent=1 // pred_fallthru
      _
    // Predicated region
    $region34: #{tpu_custom_call.1} parent=1 // pred_check
      _
    $region35: #{tpu_custom_call.1} parent=1 // pred_check_branch
      %58 = sbr.rel (0) target = $region37
    $region36: #{tpu_custom_call.1} parent=1 // pred_region
      %60 = dma.done [#allocation6], 512
    $region37: #{tpu_custom_call.1} parent=1 // pred_fallthru
      _
    %v61 = vld [vmem:[#allocation2] sm:$0xff]
    %v62 = vld [vmem:[%s1] sm:$0xff]
    %v63 = vld [vmem:[%s1 + $0x8] sm:$0xff]
    %v64 = vld [vmem:[%s1 + $0x10] sm:$0xff]
    %v65 = vld [vmem:[%s1 + $0x18] sm:$0xff]
    %v66 = vld [vmem:[%s2] sm:$0x1]
    %v68 = vperm.slane %v66, 0
    %vm70 = vcmask 261120
    %v72 = vsel %vm70, %v61, 0
    %74 = vmatpush.msra.mxu0 0.0
    %75 = vmatpush.msra.mxu0 0.0
    %76 = vmatpush.msra.mxu0 0.0
    %77 = vmatpush.msra.mxu0 0.0
    %78 = vmatpush.msra.mxu0 0.0
    %79 = vmatpush.msra.mxu0 0.0
    %80 = vmatpush.msra.mxu0 0.0
    %81 = vmatpush.msra.mxu0 0.0
    %82 = vmatpush.msra.mxu0 0.0
    %83 = vmatpush.msra.mxu0 0.0
    %84 = vmatpush.msra.mxu0 0.0
    %85 = vmatpush.msra.mxu0 0.0
    %86 = vmatpush.msra.mxu0 %v65
    %87 = vmatpush.msra.mxu0 %v64
    %88 = vmatpush.msra.mxu0 %v63
    %89 = vmatpush.msra.mxu0 %v62
    %90 = vmatmul.f32.gmra.mxu0 %v72
    %v91 = vpop.f32.mrf.mxu0
    %v92 = vadd.f32 %v68, %v91
    %93 = vdwg.mxu0
    %vm94 = vcmask 31744
    %v95 = vsel %vm94, %v92, -inf
    %96 = vmax.xlane.f32.xlu0 %v95
    %v97 = vpop.xlane.xlu0 %96
    %v98 = vsub.f32 %v92, %v97
    %v99 = vmul.f32 %v98, 1.442695
    %v100 = vpow.pop %v99
    %v101 = vsel %vm94, %v100, 0.0
    %102 = vadd.xlane.f32.xlu0 %v101
    %v103 = vpop.xlane.xlu0 %102
    %v104 = vrcp.pop %v103
    %v105 = vmul.f32 %v103, %v104
    %v106 = vsub.f32 1.0, %v105
    %v107 = vmul.f32 %v104, %v106
    %v108 = vadd.f32 %v104, %v107
    %vm109 = vweird.f32 %v103
    %vm110 = vweird.f32 %v104
    %vm111 = vmor %vm109, %vm110
    %v112 = vsel %vm111, %v104, %v108
    %v113 = vand.u32 2147483647, %v103
    %vm114 = vcmp.eq.f32.partialorder %v113, 8.507059e+37
    %v115 = vand.u32 %v103, 2147483648
    %v116 = vor.u32 1.1754944e-38, %v115
    %v117 = vsel %vm114, %v116, %v112
    %v118 = vmul.f32 %v100, %v117
    %119 = vst.msk [vmem:[%s7] sm:$0xff] %vm94, %v118
    %v120 = vld [vmem:[%s3] sm:$0xff]
    %v121 = vld [vmem:[%s3 + $0x8] sm:$0xff]
    %v122 = vld [vmem:[%s3 + $0x10] sm:$0xff]
    %v123 = vld [vmem:[%s3 + $0x18] sm:$0xff]
    %v124 = vld [vmem:[%s4] sm:$0x1]
    %v126 = vperm.slane %v124, 0
    %128 = vmatpush.msra.mxu0 0.0
    %129 = vmatpush.msra.mxu0 0.0
    %130 = vmatpush.msra.mxu0 0.0
    %131 = vmatpush.msra.mxu0 0.0
    %132 = vmatpush.msra.mxu0 0.0
    %133 = vmatpush.msra.mxu0 0.0
    %134 = vmatpush.msra.mxu0 0.0
    %135 = vmatpush.msra.mxu0 0.0
    %136 = vmatpush.msra.mxu0 0.0
    %137 = vmatpush.msra.mxu0 0.0
    %138 = vmatpush.msra.mxu0 0.0
    %139 = vmatpush.msra.mxu0 0.0
    %140 = vmatpush.msra.mxu0 %v123
    %141 = vmatpush.msra.mxu0 %v122
    %142 = vmatpush.msra.mxu0 %v121
    %143 = vmatpush.msra.mxu0 %v120
    %144 = vmatmul.f32.gmra.mxu0 %v72
    %v145 = vpop.f32.mrf.mxu0
    %v146 = vadd.f32 %v126, %v145
    %147 = vdwg.mxu0
    %v148 = vmul.f32 %v146, 1.442695
    %v149 = vpow.pop %v148
    %150 = vst.msk [vmem:[#allocation7] sm:$0xff] %vm70, %v149
    %v151 = vld [vmem:[#allocation5] sm:$0xff]
    %v152 = vld [vmem:[#allocation5 + $0x8] sm:$0xff]
    %v153 = vld [vmem:[#allocation5 + $0x10] sm:$0xff]
    %v154 = vld [vmem:[#allocation5 + $0x18] sm:$0xff]
    %v155 = vld [vmem:[%s6] sm:$0x1]
    %v157 = vperm.slane %v155, 0
    %159 = vmatpush.msra.mxu0 0.0
    %160 = vmatpush.msra.mxu0 0.0
    %161 = vmatpush.msra.mxu0 0.0
    %162 = vmatpush.msra.mxu0 0.0
    %163 = vmatpush.msra.mxu0 0.0
    %164 = vmatpush.msra.mxu0 0.0
    %165 = vmatpush.msra.mxu0 0.0
    %166 = vmatpush.msra.mxu0 0.0
    %167 = vmatpush.msra.mxu0 0.0
    %168 = vmatpush.msra.mxu0 0.0
    %169 = vmatpush.msra.mxu0 0.0
    %170 = vmatpush.msra.mxu0 0.0
    %171 = vmatpush.msra.mxu0 %v154
    %172 = vmatpush.msra.mxu0 %v153
    %173 = vmatpush.msra.mxu0 %v152
    %174 = vmatpush.msra.mxu0 %v151
    %175 = vmatmul.f32.gmra.mxu0 %v72
    %v176 = vpop.f32.mrf.mxu0
    %v177 = vadd.f32 %v157, %v176
    %178 = vdwg.mxu0
    %179 = vst.msk [vmem:[#allocation8] sm:$0xff] %vm70, %v177
    // Predicated region
    $region38: #{tpu_custom_call.1} parent=1 // pred_check
      _
    $region39: #{tpu_custom_call.1} parent=1 // pred_check_branch
      %181 = sbr.rel (0) target = $region41
    $region40: #{tpu_custom_call.1} parent=1 // pred_region
      _
    $region41: #{tpu_custom_call.1} parent=1 // pred_fallthru
      _
    // Predicated region
    $region42: #{tpu_custom_call.1} parent=1 // pred_check
      _
    $region43: #{tpu_custom_call.1} parent=1 // pred_check_branch
      %183 = sbr.rel (0) target = $region45
    $region44: #{tpu_custom_call.1} parent=1 // pred_region
      %185 = vsyncadd [#allocation4], 0
      %s187 = sshll.u32 [#allocation7], 4
      %s188 = int_to_ptr.vmem [resolvable:$true] %s187
      %s189 = sshll.u32 %s8, 4
      %s190 = int_to_ptr.hbm [resolvable:$true] %s189
      %192 = dma.vmem_to_hbm [thread:$0]  %s188, 128, %s190, [#allocation4]
    $region45: #{tpu_custom_call.1} parent=1 // pred_fallthru
      _
    // Predicated region
    $region46: #{tpu_custom_call.1} parent=1 // pred_check
      _
    $region47: #{tpu_custom_call.1} parent=1 // pred_check_branch
      %194 = sbr.rel (0) target = $region49
    $region48: #{tpu_custom_call.1} parent=1 // pred_region
      %196 = vsyncadd [#allocation9], 0
      %s198 = sshll.u32 [#allocation8], 4
      %s199 = int_to_ptr.vmem [resolvable:$true] %s198
      %s200 = sshll.u32 %s9, 4
      %s201 = int_to_ptr.hbm [resolvable:$true] %s200
      %203 = dma.vmem_to_hbm [thread:$0]  %s199, 128, %s201, [#allocation9]
    $region49: #{tpu_custom_call.1} parent=1 // pred_fallthru
      _
    // Predicated region
    $region50: #{tpu_custom_call.1} parent=1 // pred_check
      _
    $region51: #{tpu_custom_call.1} parent=1 // pred_check_branch
      %205 = sbr.rel (0) target = $region53
    $region52: #{tpu_custom_call.1} parent=1 // pred_region
      _
    $region53: #{tpu_custom_call.1} parent=1 // pred_fallthru
      _
    // Predicated region
    $region54: #{tpu_custom_call.1} parent=1 // pred_check
      _
    $region55: #{tpu_custom_call.1} parent=1 // pred_check_branch
      %207 = sbr.rel (0) target = $region57
    $region56: #{tpu_custom_call.1} parent=1 // pred_region
      %209 = dma.done [#allocation4], 128
    $region57: #{tpu_custom_call.1} parent=1 // pred_fallthru
      _
    // Predicated region
    $region58: #{tpu_custom_call.1} parent=1 // pred_check
      _
    $region59: #{tpu_custom_call.1} parent=1 // pred_check_branch
      %211 = sbr.rel (0) target = $region61
    $region60: #{tpu_custom_call.1} parent=1 // pred_region
      %213 = dma.done [#allocation9], 128
    $region61: #{tpu_custom_call.1} parent=1 // pred_fallthru
      _
    %214 = vsyncpa [#allocation3], 1
    %215 = vsyncpa [#allocation6], 1
    %216 = vsyncpa [#allocation4], 1
    %217 = vsyncpa [#allocation9], 1

</llo_original>
